<compile_context>
chip_gen: v7x
topology: tpu7x:2x2x1
jax: 0.10.0
libtpu: 0.0.40
codegen_flags: <defaults>
</compile_context>

<pallas_src>
import math

import jax
import jax.numpy as jnp
from jax.experimental import pallas as pl
from jax.experimental.pallas import tpu as pltpu

EPS = 1e-5          # nn.BatchNorm1d default eps
LANE = 128          # TPU lane width


# ---------------------------------------------------------------------------
# Host-side helpers (trace time)
# ---------------------------------------------------------------------------
def _round_up(n, m):
    return ((n + m - 1) // m) * m


def _pad2d(a, rows, cols):
    return jnp.pad(a, ((0, rows - a.shape[0]), (0, cols - a.shape[1])))


def _pad_row(v, cols):
    v = v.reshape(1, -1)
    return jnp.pad(v, ((0, 0), (0, cols - v.shape[1])))


def _default_mxu_dtype():
    """bf16 MXU inputs on chips with a bf16 vector path; f32 on v5e."""
    try:
        kind = jax.devices()[0].device_kind.lower()
    except Exception:
        return jnp.bfloat16
    if "v5 lite" in kind or "v5e" in kind or "v5lite" in kind:
        # v5e VPU has no bf16: the per-layer activation cast is extra VALU
        # work, only worth it when layers are large enough to be MXU-bound.
        return jnp.float32
    return jnp.bfloat16


def _vmem_limit_bytes():
    """~7/8 of physical VMEM (112 MiB on v5e/v6e, 56 MiB on v7x)."""
    try:
        cap = getattr(pltpu.get_tpu_info(), "vmem_capacity_bytes", None)
        if cap:
            return int(cap) * 7 // 8
    except Exception:
        pass
    return 64 * 1024 * 1024   # conservative fallback


# ---------------------------------------------------------------------------
# Fused Pallas kernel
# ---------------------------------------------------------------------------
def _bn_fold(y, gamma, beta):
    """BatchNorm1d with training-mode batch stats (two-pass, biased var)."""
    mean = jnp.mean(y, axis=0, keepdims=True)
    centered = y - mean
    var = jnp.mean(centered * centered, axis=0, keepdims=True)
    scale = gamma * jax.lax.rsqrt(var + EPS)          # rsqrt -> EUP slot
    return centered * scale + beta


def _make_decoder_kernel(n_hidden, mxu_dtype):
    def kernel(*refs):
        # refs = [x, (w, b, gamma, beta) * n_hidden, (gamma, beta, w, b), out]
        o_ref = refs[-1]
        x = refs[0][...]
        idx = 1
        for _ in range(n_hidden):
            w = refs[idx][...]                  # host-precast to mxu_dtype
            b = refs[idx + 1][...]
            g = refs[idx + 2][...]
            be = refs[idx + 3][...]
            idx += 4
            y = jnp.dot(x.astype(mxu_dtype), w,
                        preferred_element_type=jnp.float32) + b
            y = jnp.maximum(y, 0.0)             # ReLU
            x = _bn_fold(y, g, be)              # BatchNorm1d
        # final layer: BatchNorm1d -> Linear
        g = refs[idx][...]
        be = refs[idx + 1][...]
        w = refs[idx + 2][...]
        b = refs[idx + 3][...]
        x_hat = _bn_fold(x, g, be)
        out = jnp.dot(x_hat.astype(mxu_dtype), w,
                      preferred_element_type=jnp.float32) + b
        o_ref[...] = out.astype(o_ref.dtype)    # lane-dense 128-wide store

    return kernel


def decoder_forward(params, x, output_size, *, mxu_dtype=None,
                    slice_output=True):
    """Run the whole decoder in a single pallas_call (all ops fused)."""
    if mxu_dtype is None:
        mxu_dtype = _default_mxu_dtype()
    n_layers = len(params)
    n_hidden = n_layers - 1
    B, _ = x.shape

    # Sublane multiple for the matmul dtype; only the final output lane dim
    # is padded to 128 (for the unmasked lane-dense store).
    sub = 8 if mxu_dtype == jnp.float32 else 16
    feats = [params[0]["w"].shape[0]] + [p["w"].shape[1] for p in params]
    pfeat = [_round_up(f, sub) for f in feats]
    pfeat[-1] = _round_up(feats[-1], LANE)

    flops = 0
    trans = 0

    args = [_pad2d(x, B, pfeat[0])]             # activations stay f32 in HBM
    for i, p in enumerate(params):
        w, b, g, be = p["w"], p["b"], p["gamma"], p["beta"]
        r_p, c_p = pfeat[i], pfeat[i + 1]
        w_p = _pad2d(w, r_p, c_p).astype(mxu_dtype)   # host pre-cast weights
        b_p = _pad_row(b, c_p)
        flops += 2 * B * r_p * c_p
        if i == n_layers - 1:      # final layer: BN(feats[i]) then Linear
            args += [_pad_row(g, r_p), _pad_row(be, r_p), w_p, b_p]
            flops += 8 * B * r_p
            trans += r_p
        else:                      # hidden layer: Linear, ReLU, BN(feats[i+1])
            args += [w_p, b_p, _pad_row(g, c_p), _pad_row(be, c_p)]
            flops += 8 * B * c_p
            trans += c_p

    out_shape = jax.ShapeDtypeStruct((B, pfeat[-1]), jnp.float32)
    bytes_accessed = sum(int(a.size) * a.dtype.itemsize for a in args)
    bytes_accessed += B * pfeat[-1] * 4

    # No grid: every operand is mapped whole-array into VMEM exactly once
    # (single-buffered) — avoids useless double-buffering on a size-1 grid.
    vmem_spec = pl.BlockSpec(memory_space=pltpu.MemorySpace.VMEM)

    out_p = pl.pallas_call(
        _make_decoder_kernel(n_hidden, mxu_dtype),
        out_shape=out_shape,
        in_specs=[vmem_spec] * len(args),
        out_specs=vmem_spec,
        compiler_params=pltpu.CompilerParams(
            vmem_limit_bytes=_vmem_limit_bytes()),
        cost_estimate=pl.CostEstimate(
            flops=int(flops), transcendentals=int(trans),
            bytes_accessed=int(bytes_accessed)),
    )(*args)

    if slice_output:
        return out_p[:, :output_size]
    return out_p   # let downstream consume the 128-padded output directly


# ---------------------------------------------------------------------------
# Parameter construction (deterministic, mirrors Decoder.__init__/init_decoder)
# ---------------------------------------------------------------------------
def make_decoder_params(key, layer_sizes, input_size, output_size):
    sizes = [input_size] + list(layer_sizes) + [output_size]
    params = []
    for l_id in range(len(sizes) - 1):
        d_in, d_out = sizes[l_id], sizes[l_id + 1]
        key, kw, kb = jax.random.split(key, 3)
        # kaiming_normal_ (fan_in, gain=sqrt(2)) on the linear weight
        std = math.sqrt(2.0 / d_in)
        w = std * jax.random.normal(kw, (d_in, d_out), dtype=jnp.float32)
        # PyTorch Linear default bias init: U(-1/sqrt(fan_in), 1/sqrt(fan_in))
        bound = 1.0 / math.sqrt(d_in)
        b = jax.random.uniform(kb, (d_out,), minval=-bound, maxval=bound,
                               dtype=jnp.float32)
        if l_id == len(sizes) - 2:
            # final layer: BatchNorm1d(d_in) then Linear(d_in, d_out)
            gamma = jnp.ones((d_in,), jnp.float32)
            beta = jnp.zeros((d_in,), jnp.float32)
        else:
            # hidden layer: Linear(d_in, d_out), ReLU, BatchNorm1d(d_out)
            gamma = jnp.ones((d_out,), jnp.float32)
            beta = jnp.zeros((d_out,), jnp.float32)
        params.append({"w": w, "b": b, "gamma": gamma, "beta": beta})
    return params


# Pure-JAX reference (f32) for sanity checking.
def decoder_forward_ref(params, x):
    n = len(params)
    for i, p in enumerate(params):
        if i == n - 1:
            mean = jnp.mean(x, axis=0, keepdims=True)
            var = jnp.mean((x - mean) ** 2, axis=0, keepdims=True)
            x = p["gamma"] * (x - mean) / jnp.sqrt(var + EPS) + p["beta"]
            x = x @ p["w"] + p["b"]
        else:
            y = jnp.maximum(x @ p["w"] + p["b"], 0.0)
            mean = jnp.mean(y, axis=0, keepdims=True)
            var = jnp.mean((y - mean) ** 2, axis=0, keepdims=True)
            x = p["gamma"] * (y - mean) / jnp.sqrt(var + EPS) + p["beta"]
    return x


if __name__ == "__main__":
    key = jax.random.PRNGKey(0)
    batch, input_size, output_size = 8, 32, 16
    layer_sizes = [64, 48]

    key, kx = jax.random.split(key)
    x = jax.random.normal(kx, (batch, input_size), dtype=jnp.float32)

    params = make_decoder_params(key, layer_sizes, input_size, output_size)
    ref = decoder_forward_ref(params, x)

    # Exact-semantics check: f32 MXU path, tight tolerance.
    out_f32 = jax.block_until_ready(
        decoder_forward(params, x, output_size, mxu_dtype=jnp.float32))
    assert out_f32.shape == (batch, output_size)
    assert jnp.allclose(out_f32, ref, atol=1e-3, rtol=1e-3), \
        "f32 kernel mismatch vs reference"

    # Default (perf) path: bf16 MXU inputs on v6e/v7x (f32 on v5e);
    # loosened tolerance accounts for bf16 weight/activation rounding.
    out = jax.block_until_ready(decoder_forward(params, x, output_size))
    assert out.shape == (batch, output_size)
    assert jnp.allclose(out, ref, atol=2e-1, rtol=1e-1), \
        "default-dtype kernel mismatch vs reference"

    print("KERNEL_OK")
</pallas_src>

<mosaic_0001>
module attributes {stable_mosaic.version = 11 : i64} {
  func.func @kernel(%arg0: memref<8x32xf32, #tpu.memory_space<vmem>>, %arg1: memref<32x64xf32, #tpu.memory_space<vmem>>, %arg2: memref<1x64xf32, #tpu.memory_space<vmem>>, %arg3: memref<1x64xf32, #tpu.memory_space<vmem>>, %arg4: memref<1x64xf32, #tpu.memory_space<vmem>>, %arg5: memref<64x48xf32, #tpu.memory_space<vmem>>, %arg6: memref<1x48xf32, #tpu.memory_space<vmem>>, %arg7: memref<1x48xf32, #tpu.memory_space<vmem>>, %arg8: memref<1x48xf32, #tpu.memory_space<vmem>>, %arg9: memref<1x48xf32, #tpu.memory_space<vmem>>, %arg10: memref<1x48xf32, #tpu.memory_space<vmem>>, %arg11: memref<48x128xf32, #tpu.memory_space<vmem>>, %arg12: memref<1x128xf32, #tpu.memory_space<vmem>>, %arg13: memref<8x128xf32, #tpu.memory_space<vmem>>) attributes {dimension_semantics = [], scalar_prefetch = 0 : i64, scratch_operands = 0 : i64, tpu.core_type = #tpu.core_type<tc>} {
    %c0 = arith.constant 0 : index
    %c0_0 = arith.constant 0 : index
    %0 = vector.load %arg0[%c0, %c0_0] : memref<8x32xf32, #tpu.memory_space<vmem>>, vector<8x32xf32>
    %c0_1 = arith.constant 0 : index
    %c0_2 = arith.constant 0 : index
    %1 = vector.load %arg1[%c0_1, %c0_2] : memref<32x64xf32, #tpu.memory_space<vmem>>, vector<32x64xf32>
    %c0_3 = arith.constant 0 : index
    %c0_4 = arith.constant 0 : index
    %2 = vector.load %arg2[%c0_3, %c0_4] : memref<1x64xf32, #tpu.memory_space<vmem>>, vector<1x64xf32>
    %c0_5 = arith.constant 0 : index
    %c0_6 = arith.constant 0 : index
    %3 = vector.load %arg3[%c0_5, %c0_6] : memref<1x64xf32, #tpu.memory_space<vmem>>, vector<1x64xf32>
    %c0_7 = arith.constant 0 : index
    %c0_8 = arith.constant 0 : index
    %4 = vector.load %arg4[%c0_7, %c0_8] : memref<1x64xf32, #tpu.memory_space<vmem>>, vector<1x64xf32>
    %cst = arith.constant dense<0.000000e+00> : vector<8x64xf32>
    %5 = tpu.matmul %0, %1, %cst {dimension_numbers = #tpu.dot_dimension_numbers<[1], [0], [0], [1], [0, 0, 1, 1], [], []>} : vector<8x32xf32>, vector<32x64xf32>, vector<8x64xf32> -> vector<8x64xf32>
    %6 = vector.broadcast %2 : vector<1x64xf32> to vector<8x64xf32>
    %7 = arith.addf %5, %6 : vector<8x64xf32>
    %cst_9 = arith.constant 0.000000e+00 : f32
    %8 = vector.broadcast %cst_9 : f32 to vector<8x64xf32>
    %9 = arith.maximumf %7, %8 : vector<8x64xf32>
    %cst_10 = arith.constant dense<0.000000e+00> : vector<64xf32>
    %10 = vector.multi_reduction <add>, %9, %cst_10 [0] : vector<8x64xf32> to vector<64xf32>
    %11 = vector.shape_cast %10 : vector<64xf32> to vector<1x64xf32>
    %cst_11 = arith.constant 8.000000e+00 : f32
    %12 = vector.broadcast %cst_11 : f32 to vector<1x64xf32>
    %13 = arith.divf %11, %12 : vector<1x64xf32>
    %14 = vector.broadcast %13 : vector<1x64xf32> to vector<8x64xf32>
    %15 = arith.subf %9, %14 : vector<8x64xf32>
    %16 = arith.mulf %15, %15 : vector<8x64xf32>
    %cst_12 = arith.constant dense<0.000000e+00> : vector<64xf32>
    %17 = vector.multi_reduction <add>, %16, %cst_12 [0] : vector<8x64xf32> to vector<64xf32>
    %18 = vector.shape_cast %17 : vector<64xf32> to vector<1x64xf32>
    %cst_13 = arith.constant 8.000000e+00 : f32
    %19 = vector.broadcast %cst_13 : f32 to vector<1x64xf32>
    %20 = arith.divf %18, %19 : vector<1x64xf32>
    %cst_14 = arith.constant 9.99999974E-6 : f32
    %21 = vector.broadcast %cst_14 : f32 to vector<1x64xf32>
    %22 = arith.addf %20, %21 : vector<1x64xf32>
    %23 = math.rsqrt %22 : vector<1x64xf32>
    %24 = arith.mulf %3, %23 : vector<1x64xf32>
    %25 = vector.broadcast %24 : vector<1x64xf32> to vector<8x64xf32>
    %26 = arith.mulf %15, %25 : vector<8x64xf32>
    %27 = vector.broadcast %4 : vector<1x64xf32> to vector<8x64xf32>
    %28 = arith.addf %26, %27 : vector<8x64xf32>
    %c0_15 = arith.constant 0 : index
    %c0_16 = arith.constant 0 : index
    %29 = vector.load %arg5[%c0_15, %c0_16] : memref<64x48xf32, #tpu.memory_space<vmem>>, vector<64x48xf32>
    %c0_17 = arith.constant 0 : index
    %c0_18 = arith.constant 0 : index
    %30 = vector.load %arg6[%c0_17, %c0_18] : memref<1x48xf32, #tpu.memory_space<vmem>>, vector<1x48xf32>
    %c0_19 = arith.constant 0 : index
    %c0_20 = arith.constant 0 : index
    %31 = vector.load %arg7[%c0_19, %c0_20] : memref<1x48xf32, #tpu.memory_space<vmem>>, vector<1x48xf32>
    %c0_21 = arith.constant 0 : index
    %c0_22 = arith.constant 0 : index
    %32 = vector.load %arg8[%c0_21, %c0_22] : memref<1x48xf32, #tpu.memory_space<vmem>>, vector<1x48xf32>
    %cst_23 = arith.constant dense<0.000000e+00> : vector<8x48xf32>
    %33 = tpu.matmul %28, %29, %cst_23 {dimension_numbers = #tpu.dot_dimension_numbers<[1], [0], [0], [1], [0, 0, 1, 1], [], []>} : vector<8x64xf32>, vector<64x48xf32>, vector<8x48xf32> -> vector<8x48xf32>
    %34 = vector.broadcast %30 : vector<1x48xf32> to vector<8x48xf32>
    %35 = arith.addf %33, %34 : vector<8x48xf32>
    %cst_24 = arith.constant 0.000000e+00 : f32
    %36 = vector.broadcast %cst_24 : f32 to vector<8x48xf32>
    %37 = arith.maximumf %35, %36 : vector<8x48xf32>
    %cst_25 = arith.constant dense<0.000000e+00> : vector<48xf32>
    %38 = vector.multi_reduction <add>, %37, %cst_25 [0] : vector<8x48xf32> to vector<48xf32>
    %39 = vector.shape_cast %38 : vector<48xf32> to vector<1x48xf32>
    %cst_26 = arith.constant 8.000000e+00 : f32
    %40 = vector.broadcast %cst_26 : f32 to vector<1x48xf32>
    %41 = arith.divf %39, %40 : vector<1x48xf32>
    %42 = vector.broadcast %41 : vector<1x48xf32> to vector<8x48xf32>
    %43 = arith.subf %37, %42 : vector<8x48xf32>
    %44 = arith.mulf %43, %43 : vector<8x48xf32>
    %cst_27 = arith.constant dense<0.000000e+00> : vector<48xf32>
    %45 = vector.multi_reduction <add>, %44, %cst_27 [0] : vector<8x48xf32> to vector<48xf32>
    %46 = vector.shape_cast %45 : vector<48xf32> to vector<1x48xf32>
    %cst_28 = arith.constant 8.000000e+00 : f32
    %47 = vector.broadcast %cst_28 : f32 to vector<1x48xf32>
    %48 = arith.divf %46, %47 : vector<1x48xf32>
    %cst_29 = arith.constant 9.99999974E-6 : f32
    %49 = vector.broadcast %cst_29 : f32 to vector<1x48xf32>
    %50 = arith.addf %48, %49 : vector<1x48xf32>
    %51 = math.rsqrt %50 : vector<1x48xf32>
    %52 = arith.mulf %31, %51 : vector<1x48xf32>
    %53 = vector.broadcast %52 : vector<1x48xf32> to vector<8x48xf32>
    %54 = arith.mulf %43, %53 : vector<8x48xf32>
    %55 = vector.broadcast %32 : vector<1x48xf32> to vector<8x48xf32>
    %56 = arith.addf %54, %55 : vector<8x48xf32>
    %c0_30 = arith.constant 0 : index
    %c0_31 = arith.constant 0 : index
    %57 = vector.load %arg9[%c0_30, %c0_31] : memref<1x48xf32, #tpu.memory_space<vmem>>, vector<1x48xf32>
    %c0_32 = arith.constant 0 : index
    %c0_33 = arith.constant 0 : index
    %58 = vector.load %arg10[%c0_32, %c0_33] : memref<1x48xf32, #tpu.memory_space<vmem>>, vector<1x48xf32>
    %c0_34 = arith.constant 0 : index
    %c0_35 = arith.constant 0 : index
    %59 = vector.load %arg11[%c0_34, %c0_35] : memref<48x128xf32, #tpu.memory_space<vmem>>, vector<48x128xf32>
    %c0_36 = arith.constant 0 : index
    %c0_37 = arith.constant 0 : index
    %60 = vector.load %arg12[%c0_36, %c0_37] : memref<1x128xf32, #tpu.memory_space<vmem>>, vector<1x128xf32>
    %cst_38 = arith.constant dense<0.000000e+00> : vector<48xf32>
    %61 = vector.multi_reduction <add>, %56, %cst_38 [0] : vector<8x48xf32> to vector<48xf32>
    %62 = vector.shape_cast %61 : vector<48xf32> to vector<1x48xf32>
    %cst_39 = arith.constant 8.000000e+00 : f32
    %63 = vector.broadcast %cst_39 : f32 to vector<1x48xf32>
    %64 = arith.divf %62, %63 : vector<1x48xf32>
    %65 = vector.broadcast %64 : vector<1x48xf32> to vector<8x48xf32>
    %66 = arith.subf %56, %65 : vector<8x48xf32>
    %67 = arith.mulf %66, %66 : vector<8x48xf32>
    %cst_40 = arith.constant dense<0.000000e+00> : vector<48xf32>
    %68 = vector.multi_reduction <add>, %67, %cst_40 [0] : vector<8x48xf32> to vector<48xf32>
    %69 = vector.shape_cast %68 : vector<48xf32> to vector<1x48xf32>
    %cst_41 = arith.constant 8.000000e+00 : f32
    %70 = vector.broadcast %cst_41 : f32 to vector<1x48xf32>
    %71 = arith.divf %69, %70 : vector<1x48xf32>
    %cst_42 = arith.constant 9.99999974E-6 : f32
    %72 = vector.broadcast %cst_42 : f32 to vector<1x48xf32>
    %73 = arith.addf %71, %72 : vector<1x48xf32>
    %74 = math.rsqrt %73 : vector<1x48xf32>
    %75 = arith.mulf %57, %74 : vector<1x48xf32>
    %76 = vector.broadcast %75 : vector<1x48xf32> to vector<8x48xf32>
    %77 = arith.mulf %66, %76 : vector<8x48xf32>
    %78 = vector.broadcast %58 : vector<1x48xf32> to vector<8x48xf32>
    %79 = arith.addf %77, %78 : vector<8x48xf32>
    %cst_43 = arith.constant dense<0.000000e+00> : vector<8x128xf32>
    %80 = tpu.matmul %79, %59, %cst_43 {dimension_numbers = #tpu.dot_dimension_numbers<[1], [0], [0], [1], [0, 0, 1, 1], [], []>} : vector<8x48xf32>, vector<48x128xf32>, vector<8x128xf32> -> vector<8x128xf32>
    %81 = vector.broadcast %60 : vector<1x128xf32> to vector<8x128xf32>
    %82 = arith.addf %80, %81 : vector<8x128xf32>
    %c0_44 = arith.constant 0 : index
    %c0_45 = arith.constant 0 : index
    %83 = vector.load %arg13[%c0_44, %c0_45] : memref<8x128xf32, #tpu.memory_space<vmem>>, vector<8x128xf32>
    tpu.vector_store %arg13[%c0_44, %c0_45], %82 {strides = array<i32>} : memref<8x128xf32, #tpu.memory_space<vmem>>, vector<8x128xf32>,
    return
  }
}

</mosaic_0001>

<llo_original>
// kernel: tpu_custom_call.1
$region0: #{tpu_custom_call.1}
  #allocation0 [shape = 'u32[]', space=smem, size = 0x4, offset = 0x4, fixed_abs, tag = 'smem constant byte address 0x4 - core index']
  #allocation1 [shape = 'u32[144,128]{1,0:T(1,128)}', space=vmem, size = 0x12000, scoped, tag = 'internal scratch']
  %s0 = inlined_call_operand.hbm [shape: f32[8,32], index: 0, kind: input, shape index: {}]
  %s1 = inlined_call_operand.hbm [shape: f32[32,64], index: 1, kind: input, shape index: {}]
  %s2 = inlined_call_operand.hbm [shape: f32[1,64], index: 2, kind: input, shape index: {}]
  %s3 = inlined_call_operand.hbm [shape: f32[1,64], index: 3, kind: input, shape index: {}]
  %s4 = inlined_call_operand.hbm [shape: f32[1,64], index: 4, kind: input, shape index: {}]
  %s5 = inlined_call_operand.hbm [shape: f32[64,48], index: 5, kind: input, shape index: {}]
  %s6 = inlined_call_operand.hbm [shape: f32[1,48], index: 6, kind: input, shape index: {}]
  %s7 = inlined_call_operand.hbm [shape: f32[1,48], index: 7, kind: input, shape index: {}]
  %s8 = inlined_call_operand.hbm [shape: f32[1,48], index: 8, kind: input, shape index: {}]
  %s9 = inlined_call_operand.hbm [shape: f32[1,48], index: 9, kind: input, shape index: {}]
  %s10 = inlined_call_operand.hbm [shape: f32[1,48], index: 10, kind: input, shape index: {}]
  %s11 = inlined_call_operand.hbm [shape: f32[48,128], index: 11, kind: input, shape index: {}]
  %s12 = inlined_call_operand.hbm [shape: f32[1,128], index: 12, kind: input, shape index: {}]
  %s13 = inlined_call_operand.hbm [shape: f32[8,128], index: 13, kind: output, shape index: {}]
  %s14 = sld [smem:[#allocation0]]
  $region114: #{tpu_custom_call.1} parent=0
    _
  %s16 = ssub.s32 1, %s14
  %s17 = scalar_select 0, %s16, %s14
  $region1: #{tpu_custom_call.1} parent=0
    #allocation2 [shape = 'u8[4096]{0}', space=vmem, size = 0x1000, scoped, tag = 'input window, operand 0, single buffered']
    #allocation3 [shape = 's32[1]{0}', space=sflag, size = 0x4, scoped, tag = 'scoped memory for tpu_custom_call.1']
    #allocation4 [shape = 's32[1]{0}', space=sflag, size = 0x4, scoped, tag = 'scoped memory for tpu_custom_call.1']
    #allocation5 [shape = 'u8[16384]{0}', space=vmem, size = 0x4000, scoped, tag = 'input window, operand 1, single buffered']
    #allocation6 [shape = 's32[1]{0}', space=sflag, size = 0x4, scoped, tag = 'scoped memory for tpu_custom_call.1']
    #allocation7 [shape = 'u8[512]{0}', space=vmem, size = 0x400, scoped, tag = 'input window, operand 2, single buffered']
    #allocation8 [shape = 'u8[512]{0}', space=vmem, size = 0x400, scoped, tag = 'input window, operand 3, single buffered']
    #allocation9 [shape = 's32[1]{0}', space=sflag, size = 0x4, scoped, tag = 'scoped memory for tpu_custom_call.1']
    #allocation10 [shape = 'u8[512]{0}', space=vmem, size = 0x400, scoped, tag = 'input window, operand 4, single buffered']
    #allocation11 [shape = 'u8[32768]{0}', space=vmem, size = 0x8000, scoped, tag = 'input window, operand 5, single buffered']
    #allocation12 [shape = 's32[1]{0}', space=sflag, size = 0x4, scoped, tag = 'scoped memory for tpu_custom_call.1']
    #allocation13 [shape = 'u8[512]{0}', space=vmem, size = 0x400, scoped, tag = 'input window, operand 6, single buffered']
    #allocation14 [shape = 'u8[512]{0}', space=vmem, size = 0x400, scoped, tag = 'input window, operand 7, single buffered']
    #allocation15 [shape = 's32[1]{0}', space=sflag, size = 0x4, scoped, tag = 'scoped memory for tpu_custom_call.1']
    #allocation16 [shape = 'u8[512]{0}', space=vmem, size = 0x400, scoped, tag = 'input window, operand 8, single buffered']
    #allocation17 [shape = 'u8[512]{0}', space=vmem, size = 0x400, scoped, tag = 'input window, operand 9, single buffered']
    #allocation18 [shape = 's32[1]{0}', space=sflag, size = 0x4, scoped, tag = 'scoped memory for tpu_custom_call.1']
    #allocation19 [shape = 'u8[512]{0}', space=vmem, size = 0x400, scoped, tag = 'input window, operand 10, single buffered']
    #allocation20 [shape = 'u8[24576]{0}', space=vmem, size = 0x6000, scoped, tag = 'input window, operand 11, single buffered']
    #allocation21 [shape = 's32[1]{0}', space=sflag, size = 0x4, scoped, tag = 'scoped memory for tpu_custom_call.1']
    #allocation22 [shape = 'u8[512]{0}', space=vmem, size = 0x400, scoped, tag = 'input window, operand 12, single buffered']
    #allocation23 [shape = 'u8[4096]{0}', space=vmem, size = 0x1000, scoped, tag = 'output window, operand 0, single buffered']
    %18 = vsyncpa [#allocation3], 0
    %19 = vsyncpa [#allocation6], 0
    %20 = vsyncpa [#allocation9], 0
    %21 = vsyncpa [#allocation12], 0
    %22 = vsyncpa [#allocation15], 0
    %23 = vsyncpa [#allocation18], 0
    %24 = vsyncpa [#allocation21], 0
    %25 = vsyncpa [#allocation4], 0
    // Predicated region
    $region2: #{tpu_custom_call.1} parent=1 // pred_check
      _
    $region3: #{tpu_custom_call.1} parent=1 // pred_check_branch
      %27 = sbr.rel (0) target = $region5
    $region4: #{tpu_custom_call.1} parent=1 // pred_region
      %s29 = ssub.s32 128, 128
      %30 = vsyncadd [#allocation3], %s29
      %s32 = sshll.u32 [#allocation2], 4
      %s33 = int_to_ptr.vmem [resolvable:$true] %s32
      %35 = dma.hbm_to_vmem [thread:$0]  %s0, 128, %s33, [#allocation3]
    $region5: #{tpu_custom_call.1} parent=1 // pred_fallthru
      _
    // Predicated region
    $region6: #{tpu_custom_call.1} parent=1 // pred_check
      _
    $region7: #{tpu_custom_call.1} parent=1 // pred_check_branch
      %37 = sbr.rel (0) target = $region9
    $region8: #{tpu_custom_call.1} parent=1 // pred_region
      %s39 = ssub.s32 512, 512
      %40 = vsyncadd [#allocation6], %s39
      %s41 = sshll.u32 [#allocation5], 4
      %s42 = int_to_ptr.vmem [resolvable:$true] %s41
      %47 = dma.hbm_to_vmem [thread:$0]  %s1, 512, %s42, [#allocation6], 128, 128, 8
    $region9: #{tpu_custom_call.1} parent=1 // pred_fallthru
      _
    // Predicated region
    $region10: #{tpu_custom_call.1} parent=1 // pred_check
      _
    $region11: #{tpu_custom_call.1} parent=1 // pred_check_branch
      %49 = sbr.rel (0) target = $region13
    $region12: #{tpu_custom_call.1} parent=1 // pred_region
      %s51 = ssub.s32 16, 16
      %52 = vsyncadd [#allocation6], %s51
      %s54 = sshll.u32 [#allocation7], 4
      %s55 = int_to_ptr.vmem [resolvable:$true] %s54
      %57 = dma.hbm_to_vmem [thread:$0]  %s2, 16, %s55, [#allocation6]
    $region13: #{tpu_custom_call.1} parent=1 // pred_fallthru
      _
    // Predicated region
    $region14: #{tpu_custom_call.1} parent=1 // pred_check
      _
    $region15: #{tpu_custom_call.1} parent=1 // pred_check_branch
      %59 = sbr.rel (0) target = $region17
    $region16: #{tpu_custom_call.1} parent=1 // pred_region
      %s61 = ssub.s32 16, 16
      %62 = vsyncadd [#allocation9], %s61
      %s64 = sshll.u32 [#allocation8], 4
      %s65 = int_to_ptr.vmem [resolvable:$true] %s64
      %67 = dma.hbm_to_vmem [thread:$0]  %s3, 16, %s65, [#allocation9]
    $region17: #{tpu_custom_call.1} parent=1 // pred_fallthru
      _
    // Predicated region
    $region18: #{tpu_custom_call.1} parent=1 // pred_check
      _
    $region19: #{tpu_custom_call.1} parent=1 // pred_check_branch
      %69 = sbr.rel (0) target = $region21
    $region20: #{tpu_custom_call.1} parent=1 // pred_region
      %s71 = ssub.s32 16, 16
      %72 = vsyncadd [#allocation9], %s71
      %s74 = sshll.u32 [#allocation10], 4
      %s75 = int_to_ptr.vmem [resolvable:$true] %s74
      %77 = dma.hbm_to_vmem [thread:$0]  %s4, 16, %s75, [#allocation9]
    $region21: #{tpu_custom_call.1} parent=1 // pred_fallthru
      _
    // Predicated region
    $region22: #{tpu_custom_call.1} parent=1 // pred_check
      _
    $region23: #{tpu_custom_call.1} parent=1 // pred_check_branch
      %79 = sbr.rel (0) target = $region25
    $region24: #{tpu_custom_call.1} parent=1 // pred_region
      %s81 = ssub.s32 1024, 1024
      %82 = vsyncadd [#allocation12], %s81
      %s83 = sshll.u32 [#allocation11], 4
      %s84 = int_to_ptr.vmem [resolvable:$true] %s83
      %89 = dma.hbm_to_vmem [thread:$0]  %s5, 1024, %s84, [#allocation12], 128, 128, 8
    $region25: #{tpu_custom_call.1} parent=1 // pred_fallthru
      _
    // Predicated region
    $region26: #{tpu_custom_call.1} parent=1 // pred_check
      _
    $region27: #{tpu_custom_call.1} parent=1 // pred_check_branch
      %91 = sbr.rel (0) target = $region29
    $region28: #{tpu_custom_call.1} parent=1 // pred_region
      %s93 = ssub.s32 16, 16
      %94 = vsyncadd [#allocation12], %s93
      %s96 = sshll.u32 [#allocation13], 4
      %s97 = int_to_ptr.vmem [resolvable:$true] %s96
      %99 = dma.hbm_to_vmem [thread:$0]  %s6, 16, %s97, [#allocation12]
    $region29: #{tpu_custom_call.1} parent=1 // pred_fallthru
      _
    // Predicated region
    $region30: #{tpu_custom_call.1} parent=1 // pred_check
      _
    $region31: #{tpu_custom_call.1} parent=1 // pred_check_branch
      %101 = sbr.rel (0) target = $region33
    $region32: #{tpu_custom_call.1} parent=1 // pred_region
      %s103 = ssub.s32 16, 16
      %104 = vsyncadd [#allocation15], %s103
      %s106 = sshll.u32 [#allocation14], 4
      %s107 = int_to_ptr.vmem [resolvable:$true] %s106
      %109 = dma.hbm_to_vmem [thread:$0]  %s7, 16, %s107, [#allocation15]
    $region33: #{tpu_custom_call.1} parent=1 // pred_fallthru
      _
    // Predicated region
    $region34: #{tpu_custom_call.1} parent=1 // pred_check
      _
    $region35: #{tpu_custom_call.1} parent=1 // pred_check_branch
      %111 = sbr.rel (0) target = $region37
    $region36: #{tpu_custom_call.1} parent=1 // pred_region
      %s113 = ssub.s32 16, 16
      %114 = vsyncadd [#allocation15], %s113
      %s116 = sshll.u32 [#allocation16], 4
      %s117 = int_to_ptr.vmem [resolvable:$true] %s116
      %119 = dma.hbm_to_vmem [thread:$0]  %s8, 16, %s117, [#allocation15]
    $region37: #{tpu_custom_call.1} parent=1 // pred_fallthru
      _
    // Predicated region
    $region38: #{tpu_custom_call.1} parent=1 // pred_check
      _
    $region39: #{tpu_custom_call.1} parent=1 // pred_check_branch
      %121 = sbr.rel (0) target = $region41
    $region40: #{tpu_custom_call.1} parent=1 // pred_region
      %s123 = ssub.s32 16, 16
      %124 = vsyncadd [#allocation18], %s123
      %s126 = sshll.u32 [#allocation17], 4
      %s127 = int_to_ptr.vmem [resolvable:$true] %s126
      %129 = dma.hbm_to_vmem [thread:$0]  %s9, 16, %s127, [#allocation18]
    $region41: #{tpu_custom_call.1} parent=1 // pred_fallthru
      _
    // Predicated region
    $region42: #{tpu_custom_call.1} parent=1 // pred_check
      _
    $region43: #{tpu_custom_call.1} parent=1 // pred_check_branch
      %131 = sbr.rel (0) target = $region45
    $region44: #{tpu_custom_call.1} parent=1 // pred_region
      %s133 = ssub.s32 16, 16
      %134 = vsyncadd [#allocation18], %s133
      %s136 = sshll.u32 [#allocation19], 4
      %s137 = int_to_ptr.vmem [resolvable:$true] %s136
      %139 = dma.hbm_to_vmem [thread:$0]  %s10, 16, %s137, [#allocation18]
    $region45: #{tpu_custom_call.1} parent=1 // pred_fallthru
      _
    // Predicated region
    $region46: #{tpu_custom_call.1} parent=1 // pred_check
      _
    $region47: #{tpu_custom_call.1} parent=1 // pred_check_branch
      %141 = sbr.rel (0) target = $region49
    $region48: #{tpu_custom_call.1} parent=1 // pred_region
      %s143 = ssub.s32 768, 768
      %144 = vsyncadd [#allocation21], %s143
      %s145 = sshll.u32 [#allocation20], 4
      %s146 = int_to_ptr.vmem [resolvable:$true] %s145
      %151 = dma.hbm_to_vmem [thread:$0]  %s11, 768, %s146, [#allocation21], 128, 128, 8
    $region49: #{tpu_custom_call.1} parent=1 // pred_fallthru
      _
    // Predicated region
    $region50: #{tpu_custom_call.1} parent=1 // pred_check
      _
    $region51: #{tpu_custom_call.1} parent=1 // pred_check_branch
      %153 = sbr.rel (0) target = $region53
    $region52: #{tpu_custom_call.1} parent=1 // pred_region
      %s155 = ssub.s32 16, 16
      %156 = vsyncadd [#allocation21], %s155
      %s158 = sshll.u32 [#allocation22], 4
      %s159 = int_to_ptr.vmem [resolvable:$true] %s158
      %161 = dma.hbm_to_vmem [thread:$0]  %s12, 16, %s159, [#allocation21]
    $region53: #{tpu_custom_call.1} parent=1 // pred_fallthru
      _
    // Predicated region
    $region54: #{tpu_custom_call.1} parent=1 // pred_check
      _
    $region55: #{tpu_custom_call.1} parent=1 // pred_check_branch
      %163 = sbr.rel (0) target = $region57
    $region56: #{tpu_custom_call.1} parent=1 // pred_region
      %164 = dma.done [#allocation3], 128
    $region57: #{tpu_custom_call.1} parent=1 // pred_fallthru
      _
    // Predicated region
    $region58: #{tpu_custom_call.1} parent=1 // pred_check
      _
    $region59: #{tpu_custom_call.1} parent=1 // pred_check_branch
      %166 = sbr.rel (0) target = $region61
    $region60: #{tpu_custom_call.1} parent=1 // pred_region
      %167 = dma.done [#allocation6], 512
    $region61: #{tpu_custom_call.1} parent=1 // pred_fallthru
      _
    // Predicated region
    $region62: #{tpu_custom_call.1} parent=1 // pred_check
      _
    $region63: #{tpu_custom_call.1} parent=1 // pred_check_branch
      %169 = sbr.rel (0) target = $region65
    $region64: #{tpu_custom_call.1} parent=1 // pred_region
      %170 = dma.done [#allocation6], 16
    $region65: #{tpu_custom_call.1} parent=1 // pred_fallthru
      _
    // Predicated region
    $region66: #{tpu_custom_call.1} parent=1 // pred_check
      _
    $region67: #{tpu_custom_call.1} parent=1 // pred_check_branch
      %172 = sbr.rel (0) target = $region69
    $region68: #{tpu_custom_call.1} parent=1 // pred_region
      %173 = dma.done [#allocation9], 16
    $region69: #{tpu_custom_call.1} parent=1 // pred_fallthru
      _
    // Predicated region
    $region70: #{tpu_custom_call.1} parent=1 // pred_check
      _
    $region71: #{tpu_custom_call.1} parent=1 // pred_check_branch
      %175 = sbr.rel (0) target = $region73
    $region72: #{tpu_custom_call.1} parent=1 // pred_region
      %176 = dma.done [#allocation9], 16
    $region73: #{tpu_custom_call.1} parent=1 // pred_fallthru
      _
    // Predicated region
    $region74: #{tpu_custom_call.1} parent=1 // pred_check
      _
    $region75: #{tpu_custom_call.1} parent=1 // pred_check_branch
      %178 = sbr.rel (0) target = $region77
    $region76: #{tpu_custom_call.1} parent=1 // pred_region
      %179 = dma.done [#allocation12], 1024
    $region77: #{tpu_custom_call.1} parent=1 // pred_fallthru
      _
    // Predicated region
    $region78: #{tpu_custom_call.1} parent=1 // pred_check
      _
    $region79: #{tpu_custom_call.1} parent=1 // pred_check_branch
      %181 = sbr.rel (0) target = $region81
    $region80: #{tpu_custom_call.1} parent=1 // pred_region
      %182 = dma.done [#allocation12], 16
    $region81: #{tpu_custom_call.1} parent=1 // pred_fallthru
      _
    // Predicated region
    $region82: #{tpu_custom_call.1} parent=1 // pred_check
      _
    $region83: #{tpu_custom_call.1} parent=1 // pred_check_branch
      %184 = sbr.rel (0) target = $region85
    $region84: #{tpu_custom_call.1} parent=1 // pred_region
      %185 = dma.done [#allocation15], 16
    $region85: #{tpu_custom_call.1} parent=1 // pred_fallthru
      _
    // Predicated region
    $region86: #{tpu_custom_call.1} parent=1 // pred_check
      _
    $region87: #{tpu_custom_call.1} parent=1 // pred_check_branch
      %187 = sbr.rel (0) target = $region89
    $region88: #{tpu_custom_call.1} parent=1 // pred_region
      %188 = dma.done [#allocation15], 16
    $region89: #{tpu_custom_call.1} parent=1 // pred_fallthru
      _
    // Predicated region
    $region90: #{tpu_custom_call.1} parent=1 // pred_check
      _
    $region91: #{tpu_custom_call.1} parent=1 // pred_check_branch
      %190 = sbr.rel (0) target = $region93
    $region92: #{tpu_custom_call.1} parent=1 // pred_region
      %191 = dma.done [#allocation18], 16
    $region93: #{tpu_custom_call.1} parent=1 // pred_fallthru
      _
    // Predicated region
    $region94: #{tpu_custom_call.1} parent=1 // pred_check
      _
    $region95: #{tpu_custom_call.1} parent=1 // pred_check_branch
      %193 = sbr.rel (0) target = $region97
    $region96: #{tpu_custom_call.1} parent=1 // pred_region
      %194 = dma.done [#allocation18], 16
    $region97: #{tpu_custom_call.1} parent=1 // pred_fallthru
      _
    // Predicated region
    $region98: #{tpu_custom_call.1} parent=1 // pred_check
      _
    $region99: #{tpu_custom_call.1} parent=1 // pred_check_branch
      %196 = sbr.rel (0) target = $region101
    $region100: #{tpu_custom_call.1} parent=1 // pred_region
      %197 = dma.done [#allocation21], 768
    $region101: #{tpu_custom_call.1} parent=1 // pred_fallthru
      _
    // Predicated region
    $region102: #{tpu_custom_call.1} parent=1 // pred_check
      _
    $region103: #{tpu_custom_call.1} parent=1 // pred_check_branch
      %199 = sbr.rel (0) target = $region105
    $region104: #{tpu_custom_call.1} parent=1 // pred_region
      %200 = dma.done [#allocation21], 16
    $region105: #{tpu_custom_call.1} parent=1 // pred_fallthru
      _
    %v201 = vld [vmem:[#allocation2] sm:$0xff]
    %v202 = vld [vmem:[#allocation5] sm:$0xff]
    %v203 = vld [vmem:[#allocation5 + $0x8] sm:$0xff]
    %v204 = vld [vmem:[#allocation5 + $0x10] sm:$0xff]
    %v205 = vld [vmem:[#allocation5 + $0x18] sm:$0xff]
    %v206 = vld [vmem:[#allocation7] sm:$0x1]
    %v207 = vld [vmem:[#allocation8] sm:$0x1]
    %v208 = vld [vmem:[#allocation10] sm:$0x1]
    %v210 = vlaneseq
    %v211 = vshrl.u32 %v210, 7
    %v212 = vsub.s32 0, %v211
    %v213 = vrot.slane %v206, %v212
    %vm215 = vcmask 261120
    %v217 = vsel %vm215, %v201, 0
    %219 = vmatprep.subr.mxu0 0.0
    %220 = vmatpush1.msra.mxu0 %v202
    %221 = vmatprep.subr.mxu0 0.0
    %222 = vmatpush1.msra.mxu0 %v203
    %223 = vmatprep.subr.mxu0 0.0
    %224 = vmatpush1.msra.mxu0 %v204
    %225 = vmatprep.subr.mxu0 0.0
    %226 = vmatpush1.msra.mxu0 %v205
    %227 = vmatprep.subr.mxu0 0.0
    %228 = vmatpush1.msra.mxu0 0.0
    %229 = vmatprep.subr.mxu0 0.0
    %230 = vmatpush1.msra.mxu0 0.0
    %231 = vmatprep.subr.mxu0 0.0
    %232 = vmatpush1.msra.mxu0 0.0
    %233 = vmatprep.subr.mxu0 0.0
    %234 = vmatpush1.msra.mxu0 0.0
    %235 = vmatprep.subr.mxu0 0.0
    %236 = vmatpush1.msra.mxu0 0.0
    %237 = vmatprep.subr.mxu0 0.0
    %238 = vmatpush1.msra.mxu0 0.0
    %239 = vmatprep.subr.mxu0 0.0
    %240 = vmatpush1.msra.mxu0 0.0
    %241 = vmatprep.subr.mxu0 0.0
    %242 = vmatpush1.msra.mxu0 0.0
    %243 = vmatprep.subr.mxu0 0.0
    %244 = vmatpush1.msra.mxu0 0.0
    %245 = vmatprep.subr.mxu0 0.0
    %246 = vmatpush1.msra.mxu0 0.0
    %247 = vmatprep.subr.mxu0 0.0
    %248 = vmatpush1.msra.mxu0 0.0
    %249 = vmatprep.subr.mxu0 0.0
    %250 = vmatpush1.msra.mxu0 0.0
    %251 = vmatprep.subr.mxu0 0.0
    %252 = vmatpush1.msra.mxu0 0.0
    %253 = vmatprep.subr.mxu0 0.0
    %254 = vmatpush1.msra.mxu0 0.0
    %255 = vmatprep.subr.mxu0 0.0
    %256 = vmatpush1.msra.mxu0 0.0
    %257 = vmatprep.subr.mxu0 0.0
    %258 = vmatpush1.msra.mxu0 0.0
    %259 = vmatprep.subr.mxu0 0.0
    %260 = vmatpush1.msra.mxu0 0.0
    %261 = vmatprep.subr.mxu0 0.0
    %262 = vmatpush1.msra.mxu0 0.0
    %263 = vmatprep.subr.mxu0 0.0
    %264 = vmatpush1.msra.mxu0 0.0
    %265 = vmatprep.subr.mxu0 0.0
    %266 = vmatpush1.msra.mxu0 0.0
    %267 = vmatprep.subr.mxu0 0.0
    %268 = vmatpush1.msra.mxu0 0.0
    %269 = vmatprep.subr.mxu0 0.0
    %270 = vmatpush1.msra.mxu0 0.0
    %271 = vmatprep.subr.mxu0 0.0
    %272 = vmatpush1.msra.mxu0 0.0
    %273 = vmatprep.subr.mxu0 0.0
    %274 = vmatpush1.msra.mxu0 0.0
    %275 = vmatprep.subr.mxu0 0.0
    %276 = vmatpush1.msra.mxu0 0.0
    %277 = vmatprep.subr.mxu0 0.0
    %278 = vmatpush1.msra.mxu0 0.0
    %279 = vmatprep.subr.mxu0 0.0
    %280 = vmatpush1.msra.mxu0 0.0
    %281 = vmatprep.subr.mxu0 0.0
    %282 = vmatpush1.msra.mxu0 0.0
    %283 = vmatprep.mubr.f32.mxu0 0.0
    %284 = vmatmul.mubr.f32.gmra.mrb[0].mxu0 %v217
    %v285 = vpop.f32.mrb[0].mxu0
    %v286 = vadd.f32 %v213, %v285
    %v287 = vpop.f32.mrb[0].mxu0
    %288 = vdwg.mxu0
    %v289 = vmax.f32 %v286, 0.0
    %vm290 = vcmask 523264
    %v291 = vsel %vm290, %v289, 0.0
    %v292 = vrot.slane %v291, 4
    %v293 = vadd.f32 %v291, %v292
    %v294 = vrot.slane %v293, 2
    %v295 = vadd.f32 %v293, %v294
    %v296 = vrot.slane %v295, 1
    %v297 = vadd.f32 %v295, %v296
    %v298 = vrcp.pop 8.0
    %v299 = vmul.f32 %v297, %v298
    %v300 = vsub.f32 %v289, %v299
    %v301 = vmul.f32 %v300, %v300
    %v302 = vsel %vm290, %v301, 0.0
    %v303 = vrot.slane %v302, 4
    %v304 = vadd.f32 %v302, %v303
    %v305 = vrot.slane %v304, 2
    %v306 = vadd.f32 %v304, %v305
    %v307 = vrot.slane %v306, 1
    %v308 = vadd.f32 %v306, %v307
    %v309 = vmul.f32 %v308, %v298
    %v310 = vadd.f32 %v309, 1e-05
    %v311 = vrsqrt.pop %v310
    %v312 = vmul.f32 %v207, %v311
    %v314 = vlaneseq
    %v315 = vshrl.u32 %v314, 7
    %v316 = vsub.s32 0, %v315
    %v317 = vrot.slane %v312, %v316
    %v319 = vmul.f32 %v300, %v317
    %v321 = vlaneseq
    %v322 = vshrl.u32 %v321, 7
    %v323 = vsub.s32 0, %v322
    %v324 = vrot.slane %v208, %v323
    %v326 = vadd.f32 %v319, %v324
    %v327 = vld [vmem:[#allocation11] sm:$0xff]
    %v328 = vld [vmem:[#allocation11 + $0x8] sm:$0xff]
    %v329 = vld [vmem:[#allocation11 + $0x10] sm:$0xff]
    %v330 = vld [vmem:[#allocation11 + $0x18] sm:$0xff]
    %v331 = vld [vmem:[#allocation11 + $0x20] sm:$0xff]
    %v332 = vld [vmem:[#allocation11 + $0x28] sm:$0xff]
    %v333 = vld [vmem:[#allocation11 + $0x30] sm:$0xff]
    %v334 = vld [vmem:[#allocation11 + $0x38] sm:$0xff]
    %v335 = vld [vmem:[#allocation13] sm:$0x1]
    %v336 = vld [vmem:[#allocation14] sm:$0x1]
    %v337 = vld [vmem:[#allocation16] sm:$0x1]
    %v339 = vlaneseq
    %v340 = vshrl.u32 %v339, 7
    %v341 = vsub.s32 0, %v340
    %v342 = vrot.slane %v335, %v341
    %v345 = vsel %vm290, %v326, 0
    %347 = vmatprep.subr.mxu0 0.0
    %348 = vmatpush1.msra.mxu0 %v327
    %349 = vmatprep.subr.mxu0 0.0
    %350 = vmatpush1.msra.mxu0 %v328
    %351 = vmatprep.subr.mxu0 0.0
    %352 = vmatpush1.msra.mxu0 %v329
    %353 = vmatprep.subr.mxu0 0.0
    %354 = vmatpush1.msra.mxu0 %v330
    %355 = vmatprep.subr.mxu0 0.0
    %356 = vmatpush1.msra.mxu0 %v331
    %357 = vmatprep.subr.mxu0 0.0
    %358 = vmatpush1.msra.mxu0 %v332
    %359 = vmatprep.subr.mxu0 0.0
    %360 = vmatpush1.msra.mxu0 %v333
    %361 = vmatprep.subr.mxu0 0.0
    %362 = vmatpush1.msra.mxu0 %v334
    %363 = vmatprep.subr.mxu0 0.0
    %364 = vmatpush1.msra.mxu0 0.0
    %365 = vmatprep.subr.mxu0 0.0
    %366 = vmatpush1.msra.mxu0 0.0
    %367 = vmatprep.subr.mxu0 0.0
    %368 = vmatpush1.msra.mxu0 0.0
    %369 = vmatprep.subr.mxu0 0.0
    %370 = vmatpush1.msra.mxu0 0.0
    %371 = vmatprep.subr.mxu0 0.0
    %372 = vmatpush1.msra.mxu0 0.0
    %373 = vmatprep.subr.mxu0 0.0
    %374 = vmatpush1.msra.mxu0 0.0
    %375 = vmatprep.subr.mxu0 0.0
    %376 = vmatpush1.msra.mxu0 0.0
    %377 = vmatprep.subr.mxu0 0.0
    %378 = vmatpush1.msra.mxu0 0.0
    %379 = vmatprep.subr.mxu0 0.0
    %380 = vmatpush1.msra.mxu0 0.0
    %381 = vmatprep.subr.mxu0 0.0
    %382 = vmatpush1.msra.mxu0 0.0
    %383 = vmatprep.subr.mxu0 0.0
    %384 = vmatpush1.msra.mxu0 0.0
    %385 = vmatprep.subr.mxu0 0.0
    %386 = vmatpush1.msra.mxu0 0.0
    %387 = vmatprep.subr.mxu0 0.0
    %388 = vmatpush1.msra.mxu0 0.0
    %389 = vmatprep.subr.mxu0 0.0
    %390 = vmatpush1.msra.mxu0 0.0
    %391 = vmatprep.subr.mxu0 0.0
    %392 = vmatpush1.msra.mxu0 0.0
    %393 = vmatprep.subr.mxu0 0.0
    %394 = vmatpush1.msra.mxu0 0.0
    %395 = vmatprep.subr.mxu0 0.0
    %396 = vmatpush1.msra.mxu0 0.0
    %397 = vmatprep.subr.mxu0 0.0
    %398 = vmatpush1.msra.mxu0 0.0
    %399 = vmatprep.subr.mxu0 0.0
    %400 = vmatpush1.msra.mxu0 0.0
    %401 = vmatprep.subr.mxu0 0.0
    %402 = vmatpush1.msra.mxu0 0.0
    %403 = vmatprep.subr.mxu0 0.0
    %404 = vmatpush1.msra.mxu0 0.0
    %405 = vmatprep.subr.mxu0 0.0
    %406 = vmatpush1.msra.mxu0 0.0
    %407 = vmatprep.subr.mxu0 0.0
    %408 = vmatpush1.msra.mxu0 0.0
    %409 = vmatprep.subr.mxu0 0.0
    %410 = vmatpush1.msra.mxu0 0.0
    %411 = vmatprep.mubr.f32.mxu0 0.0
    %412 = vmatmul.mubr.f32.gmra.mrb[0].mxu0 %v345
    %v413 = vpop.f32.mrb[0].mxu0
    %v414 = vadd.f32 %v342, %v413
    %v415 = vpop.f32.mrb[0].mxu0
    %416 = vdwg.mxu0
    %v417 = vmax.f32 %v414, 0.0
    %vm418 = vcmask 392192
    %v419 = vsel %vm418, %v417, 0.0
    %v420 = vrot.slane %v419, 4
    %v421 = vadd.f32 %v419, %v420
    %v422 = vrot.slane %v421, 2
    %v423 = vadd.f32 %v421, %v422
    %v424 = vrot.slane %v423, 1
    %v425 = vadd.f32 %v423, %v424
    %v426 = vmul.f32 %v425, %v298
    %v427 = vsub.f32 %v417, %v426
    %v428 = vmul.f32 %v427, %v427
    %v429 = vsel %vm418, %v428, 0.0
    %v430 = vrot.slane %v429, 4
    %v431 = vadd.f32 %v429, %v430
    %v432 = vrot.slane %v431, 2
    %v433 = vadd.f32 %v431, %v432
    %v434 = vrot.slane %v433, 1
    %v435 = vadd.f32 %v433, %v434
    %v436 = vmul.f32 %v435, %v298
    %v437 = vadd.f32 %v436, 1e-05
    %v438 = vrsqrt.pop %v437
    %v439 = vmul.f32 %v336, %v438
    %v441 = vlaneseq
    %v442 = vshrl.u32 %v441, 7
    %v443 = vsub.s32 0, %v442
    %v444 = vrot.slane %v439, %v443
    %v446 = vmul.f32 %v427, %v444
    %v448 = vlaneseq
    %v449 = vshrl.u32 %v448, 7
    %v450 = vsub.s32 0, %v449
    %v451 = vrot.slane %v337, %v450
    %v453 = vadd.f32 %v446, %v451
    %v454 = vld [vmem:[#allocation17] sm:$0x1]
    %v455 = vld [vmem:[#allocation19] sm:$0x1]
    %v456 = vld [vmem:[#allocation20] sm:$0xff]
    %v457 = vld [vmem:[#allocation20 + $0x8] sm:$0xff]
    %v458 = vld [vmem:[#allocation20 + $0x10] sm:$0xff]
    %v459 = vld [vmem:[#allocation20 + $0x18] sm:$0xff]
    %v460 = vld [vmem:[#allocation20 + $0x20] sm:$0xff]
    %v461 = vld [vmem:[#allocation20 + $0x28] sm:$0xff]
    %v462 = vld [vmem:[#allocation22] sm:$0x1]
    %v463 = vsel %vm418, %v453, 0.0
    %v464 = vrot.slane %v463, 4
    %v465 = vadd.f32 %v463, %v464
    %v466 = vrot.slane %v465, 2
    %v467 = vadd.f32 %v465, %v466
    %v468 = vrot.slane %v467, 1
    %v469 = vadd.f32 %v467, %v468
    %v470 = vmul.f32 %v469, %v298
    %v471 = vsub.f32 %v453, %v470
    %v472 = vmul.f32 %v471, %v471
    %v473 = vsel %vm418, %v472, 0.0
    %v474 = vrot.slane %v473, 4
    %v475 = vadd.f32 %v473, %v474
    %v476 = vrot.slane %v475, 2
    %v477 = vadd.f32 %v475, %v476
    %v478 = vrot.slane %v477, 1
    %v479 = vadd.f32 %v477, %v478
    %v480 = vmul.f32 %v479, %v298
    %v481 = vadd.f32 %v480, 1e-05
    %v482 = vrsqrt.pop %v481
    %v483 = vmul.f32 %v454, %v482
    %v485 = vlaneseq
    %v486 = vshrl.u32 %v485, 7
    %v487 = vsub.s32 0, %v486
    %v488 = vrot.slane %v483, %v487
    %v490 = vmul.f32 %v471, %v488
    %v492 = vlaneseq
    %v493 = vshrl.u32 %v492, 7
    %v494 = vsub.s32 0, %v493
    %v495 = vrot.slane %v455, %v494
    %v497 = vadd.f32 %v490, %v495
    %v499 = vlaneseq
    %v500 = vshrl.u32 %v499, 7
    %v501 = vsub.s32 0, %v500
    %v502 = vrot.slane %v462, %v501
    %v505 = vsel %vm418, %v497, 0
    %507 = vmatprep.subr.mxu0 0.0
    %508 = vmatpush1.msra.mxu0 %v456
    %509 = vmatprep.subr.mxu0 0.0
    %510 = vmatpush1.msra.mxu0 %v457
    %511 = vmatprep.subr.mxu0 0.0
    %512 = vmatpush1.msra.mxu0 %v458
    %513 = vmatprep.subr.mxu0 0.0
    %514 = vmatpush1.msra.mxu0 %v459
    %515 = vmatprep.subr.mxu0 0.0
    %516 = vmatpush1.msra.mxu0 %v460
    %517 = vmatprep.subr.mxu0 0.0
    %518 = vmatpush1.msra.mxu0 %v461
    %519 = vmatprep.subr.mxu0 0.0
    %520 = vmatpush1.msra.mxu0 0.0
    %521 = vmatprep.subr.mxu0 0.0
    %522 = vmatpush1.msra.mxu0 0.0
    %523 = vmatprep.subr.mxu0 0.0
    %524 = vmatpush1.msra.mxu0 0.0
    %525 = vmatprep.subr.mxu0 0.0
    %526 = vmatpush1.msra.mxu0 0.0
    %527 = vmatprep.subr.mxu0 0.0
    %528 = vmatpush1.msra.mxu0 0.0
    %529 = vmatprep.subr.mxu0 0.0
    %530 = vmatpush1.msra.mxu0 0.0
    %531 = vmatprep.subr.mxu0 0.0
    %532 = vmatpush1.msra.mxu0 0.0
    %533 = vmatprep.subr.mxu0 0.0
    %534 = vmatpush1.msra.mxu0 0.0
    %535 = vmatprep.subr.mxu0 0.0
    %536 = vmatpush1.msra.mxu0 0.0
    %537 = vmatprep.subr.mxu0 0.0
    %538 = vmatpush1.msra.mxu0 0.0
    %539 = vmatprep.subr.mxu0 0.0
    %540 = vmatpush1.msra.mxu0 0.0
    %541 = vmatprep.subr.mxu0 0.0
    %542 = vmatpush1.msra.mxu0 0.0
    %543 = vmatprep.subr.mxu0 0.0
    %544 = vmatpush1.msra.mxu0 0.0
    %545 = vmatprep.subr.mxu0 0.0
    %546 = vmatpush1.msra.mxu0 0.0
    %547 = vmatprep.subr.mxu0 0.0
    %548 = vmatpush1.msra.mxu0 0.0
    %549 = vmatprep.subr.mxu0 0.0
    %550 = vmatpush1.msra.mxu0 0.0
    %551 = vmatprep.subr.mxu0 0.0
    %552 = vmatpush1.msra.mxu0 0.0
    %553 = vmatprep.subr.mxu0 0.0
    %554 = vmatpush1.msra.mxu0 0.0
    %555 = vmatprep.subr.mxu0 0.0
    %556 = vmatpush1.msra.mxu0 0.0
    %557 = vmatprep.subr.mxu0 0.0
    %558 = vmatpush1.msra.mxu0 0.0
    %559 = vmatprep.subr.mxu0 0.0
    %560 = vmatpush1.msra.mxu0 0.0
    %561 = vmatprep.subr.mxu0 0.0
    %562 = vmatpush1.msra.mxu0 0.0
    %563 = vmatprep.subr.mxu0 0.0
    %564 = vmatpush1.msra.mxu0 0.0
    %565 = vmatprep.subr.mxu0 0.0
    %566 = vmatpush1.msra.mxu0 0.0
    %567 = vmatprep.subr.mxu0 0.0
    %568 = vmatpush1.msra.mxu0 0.0
    %569 = vmatprep.subr.mxu0 0.0
    %570 = vmatpush1.msra.mxu0 0.0
    %571 = vmatprep.mubr.f32.mxu0 0.0
    %572 = vmatmul.mubr.f32.gmra.mrb[0].mxu0 %v505
    %v573 = vpop.f32.mrb[0].mxu0
    %v574 = vadd.f32 %v502, %v573
    %v575 = vpop.f32.mrb[0].mxu0
    %576 = vdwg.mxu0
    %577 = vst [vmem:[#allocation23] sm:$0xff] %v574
    // Predicated region
    $region106: #{tpu_custom_call.1} parent=1 // pred_check
      _
    $region107: #{tpu_custom_call.1} parent=1 // pred_check_branch
      %579 = sbr.rel (0) target = $region109
    $region108: #{tpu_custom_call.1} parent=1 // pred_region
      %s581 = ssub.s32 128, 128
      %582 = vsyncadd [#allocation4], %s581
      %s584 = sshll.u32 [#allocation23], 4
      %s585 = int_to_ptr.vmem [resolvable:$true] %s584
      %587 = dma.vmem_to_hbm [thread:$0]  %s585, 128, %s13, [#allocation4]
    $region109: #{tpu_custom_call.1} parent=1 // pred_fallthru
      _
    // Predicated region
    $region110: #{tpu_custom_call.1} parent=1 // pred_check
      _
    $region111: #{tpu_custom_call.1} parent=1 // pred_check_branch
      %589 = sbr.rel (0) target = $region113
    $region112: #{tpu_custom_call.1} parent=1 // pred_region
      %590 = dma.done [#allocation4], 128
    $region113: #{tpu_custom_call.1} parent=1 // pred_fallthru
      _
    %591 = vsyncpa [#allocation3], 1
    %592 = vsyncpa [#allocation6], 1
    %593 = vsyncpa [#allocation9], 1
    %594 = vsyncpa [#allocation12], 1
    %595 = vsyncpa [#allocation15], 1
    %596 = vsyncpa [#allocation18], 1
    %597 = vsyncpa [#allocation21], 1
    %598 = vsyncpa [#allocation4], 1

</llo_original>
